<compile_context>
chip_gen: v5e
topology: v5e:2x2
jax: 0.10.0
libtpu: 0.0.40
codegen_flags: <defaults>
</compile_context>

<pallas_src>
import functools

import jax
import jax.numpy as jnp
from jax.experimental import pallas as pl
from jax.experimental.pallas import tpu as pltpu


def _mot_kernel(x_ref, inv_ref, o_ref, acc_ref, *, t_total):
    """Streaming sum over T into an f32 accumulator, scaled at the end."""
    k = pl.program_id(2)
    _, tt, td = x_ref.shape  # static Python ints at trace time

    @pl.when(k == 0)
    def _init():
        acc_ref[...] = jnp.zeros_like(acc_ref)

    def _accum_full():
        # Cast fused into the reduction: no whole-tile f32 temporary.
        acc_ref[...] += jnp.sum(x_ref[...], axis=1, dtype=jnp.float32)

    if t_total % tt == 0:
        # T divides evenly into chunks -> pure VPU add on the hot path.
        _accum_full()
    else:
        last = pl.num_programs(2) - 1

        @pl.when(k != last)
        def _full_chunk():
            _accum_full()

        @pl.when(k == last)
        def _tail_chunk():
            # Mask out rows past the true T (the block buffer tail is stale).
            valid = t_total - k * tt
            keep = (jax.lax.broadcasted_iota(jnp.int32, (tt, td), 0) < valid)[None]
            chunk = jnp.where(keep, x_ref[...], jnp.zeros((), x_ref.dtype))
            acc_ref[...] += jnp.sum(chunk, axis=1, dtype=jnp.float32)

    @pl.when(k == pl.num_programs(2) - 1)
    def _finalize():
        o_ref[...] = (acc_ref[...] * inv_ref[...]).astype(o_ref.dtype)


def mean_over_time(x, mask=None):
    """Pallas implementation of MeanOverTime.forward.

    x: (B, T, D); mask: (B, 1, T) (or (B, T)) or None.  Returns (B, D) float32.
    """
    B, T, D = x.shape

    # ---- per-row inverse scale, computed in the wrapper (tiny XLA reduce) ----
    if mask is not None:
        cnt = jnp.sum(mask.reshape(B, -1).astype(jnp.float32), axis=1).reshape(B, 1)
        inv = (1.0 / cnt).astype(jnp.float32)
    else:
        inv = jnp.full((B, 1), 1.0 / float(T), dtype=jnp.float32)

    # ---- tile selection: (8,128)-legal, no input padding, ~8 MiB x buffer ----
    TD = min(D, 512) if D % 128 == 0 else D          # lane dim (full D if unaligned)
    TB = B if B < 8 else 8                           # full B if small, else 8-aligned
    itemsize = jnp.dtype(x.dtype).itemsize
    budget = 8 * 1024 * 1024                         # bytes per x buffer (x2 for pipelining)

    tt = budget // max(1, TB * TD * itemsize)
    if tt >= T:
        TT = T                                       # whole T resident per step
        # T fits in one step -> grow the batch tile instead to amortize overhead.
        tb = budget // max(1, TT * TD * itemsize)
        if tb >= B:
            TB = B
        elif tb >= 8:
            TB = (tb // 8) * 8
    else:
        TT = max(8, (tt // 8) * 8)                   # multiple of 8 (sublane dim)
    TT = min(TT, T)

    grid = (pl.cdiv(B, TB), pl.cdiv(D, TD), pl.cdiv(T, TT))  # reduction axis last

    out = pl.pallas_call(
        functools.partial(_mot_kernel, t_total=T),
        out_shape=jax.ShapeDtypeStruct((B, D), jnp.float32),
        grid_spec=pltpu.PrefetchScalarGridSpec(
            num_scalar_prefetch=0,
            grid=grid,
            in_specs=[
                pl.BlockSpec((TB, TT, TD), lambda b, d, k: (b, k, d)),
                # (B, 1) inverse scale: depends only on the batch tile.
                pl.BlockSpec((TB, 1), lambda b, d, k: (b, 0)),
            ],
            out_specs=pl.BlockSpec((TB, TD), lambda b, d, k: (b, d)),
            scratch_shapes=[pltpu.VMEM((TB, TD), jnp.float32)],  # running f32 sum
        ),
        compiler_params=pltpu.CompilerParams(
            dimension_semantics=("parallel", "parallel", "arbitrary"),
            vmem_limit_bytes=48 * 1024 * 1024,
        ),
    )(x, inv)

    return out


def _check(B, T, D, key):
    kx, km = jax.random.split(key)
    x = jax.random.normal(kx, (B, T, D), dtype=jnp.float32)
    # Binary mask (B, 1, T) with >= 1 valid timestep per row (as in padded seqs).
    mask = (jax.random.uniform(km, (B, 1, T)) > 0.4).astype(jnp.float32)
    mask = mask.at[:, :, 0].set(1.0)

    out_masked = jax.block_until_ready(mean_over_time(x, mask))
    ref_masked = x.sum(axis=1) / mask[:, 0, :].sum(axis=1, keepdims=True)
    assert out_masked.shape == (B, D)
    assert jnp.allclose(out_masked, ref_masked, atol=1e-5, rtol=1e-5), (B, T, D, "masked")

    out_plain = jax.block_until_ready(mean_over_time(x))
    ref_plain = x.mean(axis=1)
    assert out_plain.shape == (B, D)
    assert jnp.allclose(out_plain, ref_plain, atol=1e-5, rtol=1e-5), (B, T, D, "plain")


if __name__ == "__main__":
    key = jax.random.PRNGKey(0)
    k1, k2, k3 = jax.random.split(key, 3)

    # Small shape consistent with the module (batch=2, seq=8, hidden=32).
    _check(2, 8, 32, k1)
    # Larger shape: multi-step T accumulation with a ragged T tail (in-kernel mask).
    _check(3, 2600, 384, k2)
    # Unaligned hidden dim (< 128): TD = D full-dim path with masked output stores.
    _check(2, 50, 33, k3)

    print("KERNEL_OK")
</pallas_src>

<mosaic_0001>
module attributes {stable_mosaic.version = 11 : i64} {
  func.func @_mot_kernel(%arg0: i32, %arg1: i32, %arg2: i32, %arg3: memref<2x8x32xf32, #tpu.memory_space<vmem>>, %arg4: memref<2x1xf32, #tpu.memory_space<vmem>>, %arg5: memref<2x32xf32, #tpu.memory_space<vmem>>, %arg6: memref<2x32xf32, #tpu.memory_space<vmem>>) attributes {dimension_semantics = [#tpu.dimension_semantics<parallel>, #tpu.dimension_semantics<parallel>, #tpu.dimension_semantics<arbitrary>], iteration_bounds = array<i64: 1, 1, 1>, scalar_prefetch = 0 : i64, scratch_operands = 1 : i64, tpu.core_type = #tpu.core_type<tc>, window_params = [{transform_indices = @transform_0, window_bounds = array<i64: 2, 8, 32>}, {transform_indices = @transform_1, window_bounds = array<i64: 2, 1>}, {transform_indices = @transform_2, window_bounds = array<i64: 2, 32>}]} {
    %c0_i32 = arith.constant 0 : i32
    %0 = arith.cmpi eq, %arg2, %c0_i32 : i32
    %1 = arith.extui %0 : i1 to i32
    %c0_i32_0 = arith.constant 0 : i32
    %2 = arith.cmpi ne, %1, %c0_i32_0 : i32
    scf.if %2 {
      %cst_9 = arith.constant 0.000000e+00 : f32
      %11 = vector.broadcast %cst_9 : f32 to vector<2x32xf32>
      %c0_10 = arith.constant 0 : index
      %c0_11 = arith.constant 0 : index
      %12 = vector.load %arg6[%c0_10, %c0_11] : memref<2x32xf32, #tpu.memory_space<vmem>>, vector<2x32xf32>
      tpu.vector_store %arg6[%c0_10, %c0_11], %11 {strides = array<i32>} : memref<2x32xf32, #tpu.memory_space<vmem>>, vector<2x32xf32>,
    } else {
    }
    %c0 = arith.constant 0 : index
    %c0_1 = arith.constant 0 : index
    %3 = vector.load %arg6[%c0, %c0_1] : memref<2x32xf32, #tpu.memory_space<vmem>>, vector<2x32xf32>
    %c0_2 = arith.constant 0 : index
    %c0_3 = arith.constant 0 : index
    %c0_4 = arith.constant 0 : index
    %4 = vector.load %arg3[%c0_2, %c0_3, %c0_4] : memref<2x8x32xf32, #tpu.memory_space<vmem>>, vector<2x8x32xf32>
    %cst = arith.constant dense<0.000000e+00> : vector<2x32xf32>
    %5 = vector.multi_reduction <add>, %4, %cst [1] : vector<2x8x32xf32> to vector<2x32xf32>
    %6 = arith.addf %3, %5 : vector<2x32xf32>
    %c0_5 = arith.constant 0 : index
    %c0_6 = arith.constant 0 : index
    %7 = vector.load %arg6[%c0_5, %c0_6] : memref<2x32xf32, #tpu.memory_space<vmem>>, vector<2x32xf32>
    tpu.vector_store %arg6[%c0_5, %c0_6], %6 {strides = array<i32>} : memref<2x32xf32, #tpu.memory_space<vmem>>, vector<2x32xf32>,
    %c0_i32_7 = arith.constant 0 : i32
    %8 = arith.cmpi eq, %arg2, %c0_i32_7 : i32
    %9 = arith.extui %8 : i1 to i32
    %c0_i32_8 = arith.constant 0 : i32
    %10 = arith.cmpi ne, %9, %c0_i32_8 : i32
    scf.if %10 {
      %c0_9 = arith.constant 0 : index
      %c0_10 = arith.constant 0 : index
      %11 = vector.load %arg6[%c0_9, %c0_10] : memref<2x32xf32, #tpu.memory_space<vmem>>, vector<2x32xf32>
      %c0_11 = arith.constant 0 : index
      %c0_12 = arith.constant 0 : index
      %12 = vector.load %arg4[%c0_11, %c0_12] : memref<2x1xf32, #tpu.memory_space<vmem>>, vector<2x1xf32>
      %13 = vector.broadcast %12 : vector<2x1xf32> to vector<2x32xf32>
      %14 = arith.mulf %11, %13 : vector<2x32xf32>
      %c0_13 = arith.constant 0 : index
      %c0_14 = arith.constant 0 : index
      %15 = vector.load %arg5[%c0_13, %c0_14] : memref<2x32xf32, #tpu.memory_space<vmem>>, vector<2x32xf32>
      tpu.vector_store %arg5[%c0_13, %c0_14], %14 {strides = array<i32>} : memref<2x32xf32, #tpu.memory_space<vmem>>, vector<2x32xf32>,
    } else {
    }
    return
  }
  func.func @transform_0(%arg0: i32, %arg1: i32, %arg2: i32) -> (i32, i32, i32) {
    %c0_i32 = arith.constant 0 : i32
    return %arg0, %arg2, %arg1 : i32, i32, i32
  }
  func.func @transform_1(%arg0: i32, %arg1: i32, %arg2: i32) -> (i32, i32) {
    %c0_i32 = arith.constant 0 : i32
    %c0_i32_0 = arith.constant 0 : i32
    return %arg0, %c0_i32 : i32, i32
  }
  func.func @transform_2(%arg0: i32, %arg1: i32, %arg2: i32) -> (i32, i32) {
    %c0_i32 = arith.constant 0 : i32
    return %arg0, %arg1 : i32, i32
  }
}

</mosaic_0001>

<llo_original>
// kernel: tpu_custom_call.1
$region0: #{tpu_custom_call.1}
  #allocation0 [shape = 'u32[]', space=smem, size = 0x4, offset = 0x4, fixed_abs, tag = 'smem constant byte address 0x4 - core index']
  #allocation1 [shape = 'u32[72,128]{1,0:T(1,128)}', space=vmem, size = 0x9000, scoped, tag = 'internal scratch']
  #allocation2 [shape = 'f32[2,32]{1,0:T(2,128)}', space=vmem, size = 0x400, scoped, tag = 'scratch operand']
  %s0 = inlined_call_operand.hbm [shape: f32[2,8,32], index: 0, kind: input, shape index: {}]
  %s1 = inlined_call_operand.vmem [shape: f32[2,1], index: 1, kind: input, shape index: {}]
  %s2 = inlined_call_operand.hbm [shape: f32[2,32], index: 2, kind: output, shape index: {}]
  %s3 = sld [smem:[#allocation0]]
  $region30: #{tpu_custom_call.1} parent=0
    _
  %s5 = ssub.s32 1, %s3
  %s6 = scalar_select 0, %s5, %s3
  $region1: #{tpu_custom_call.1} parent=0
    #allocation3 [shape = 'u8[8192]{0}', space=vmem, size = 0x2000, scoped, tag = 'input window, operand 0, single buffered']
    #allocation4 [shape = 's32[1]{0}', space=sflag, size = 0x4, scoped, tag = 'scoped memory for tpu_custom_call.1']
    #allocation5 [shape = 's32[1]{0}', space=sflag, size = 0x4, scoped, tag = 'scoped memory for tpu_custom_call.1']
    #allocation6 [shape = 'u8[1024]{0}', space=vmem, size = 0x400, scoped, tag = 'output window, operand 0, single buffered']
    %7 = vsyncpa [#allocation4], 0
    %8 = vsyncpa [#allocation5], 0
    // Predicated region
    $region2: #{tpu_custom_call.1} parent=1 // pred_check
      _
    $region3: #{tpu_custom_call.1} parent=1 // pred_check_branch
      %10 = sbr.rel (0) target = $region5
    $region4: #{tpu_custom_call.1} parent=1 // pred_region
      %12 = vsyncadd [#allocation4], 0
      %s13 = sshll.u32 %s0, 4
      %s14 = int_to_ptr.hbm [resolvable:$true] %s13
      %s15 = sshll.u32 [#allocation3], 4
      %s16 = int_to_ptr.vmem [resolvable:$true] %s15
      %21 = dma.hbm_to_vmem [thread:$0]  %s14, 256, %s16, [#allocation4], 128, 128, 8
    $region5: #{tpu_custom_call.1} parent=1 // pred_fallthru
      _
    // Predicated region
    $region6: #{tpu_custom_call.1} parent=1 // pred_check
      _
    $region7: #{tpu_custom_call.1} parent=1 // pred_check_branch
      %23 = sbr.rel (0) target = $region9
    $region8: #{tpu_custom_call.1} parent=1 // pred_region
      _
    $region9: #{tpu_custom_call.1} parent=1 // pred_fallthru
      _
    // Predicated region
    $region10: #{tpu_custom_call.1} parent=1 // pred_check
      _
    $region11: #{tpu_custom_call.1} parent=1 // pred_check_branch
      %25 = sbr.rel (0) target = $region13
    $region12: #{tpu_custom_call.1} parent=1 // pred_region
      %27 = dma.done [#allocation4], 256
    $region13: #{tpu_custom_call.1} parent=1 // pred_fallthru
      _
    %p28 = scmp.eq.s32.totalorder 0, 0
    // Predicated region
    $region14: #{tpu_custom_call.1} parent=1 // pred_check
      %p29 = pneg %p28
    $region15: #{tpu_custom_call.1} parent=1 // pred_check_branch
      %31 = sbr.rel (%p29) target = $region17
    $region16: #{tpu_custom_call.1} parent=1 // pred_region
      %vm32 = vcmask 254976
      %33 = vst.msk [vmem:[#allocation2] sm:$0x3] %vm32, 0.0
    $region17: #{tpu_custom_call.1} parent=1 // pred_fallthru
      _
    %v34 = vld [vmem:[#allocation2] sm:$0x3]
    %v35 = vld [vmem:[#allocation3] sm:$0xff]
    %v36 = vld [vmem:[#allocation3 + $0x8] sm:$0xff]
    %vm37 = vcmask 261120
    %v38 = vsel %vm37, %v35, 0.0
    %v39 = vrot.slane %v38, 4
    %v40 = vadd.f32 %v38, %v39
    %v41 = vrot.slane %v40, 2
    %v42 = vadd.f32 %v40, %v41
    %v43 = vrot.slane %v42, 1
    %v44 = vadd.f32 %v42, %v43
    %v45 = vsel %vm37, %v36, 0.0
    %v46 = vrot.slane %v45, 4
    %v47 = vadd.f32 %v45, %v46
    %v48 = vrot.slane %v47, 2
    %v49 = vadd.f32 %v47, %v48
    %v50 = vrot.slane %v49, 1
    %v51 = vadd.f32 %v49, %v50
    %vm54 = vcmask 1041409
    %v55 = vsel %vm54, %v51, %v44
    %v57 = vadd.f32 %v34, %v55
    %vm58 = vcmask 254976
    %59 = vst.msk [vmem:[#allocation2] sm:$0x3] %vm58, %v57
    // Predicated region
    $region18: #{tpu_custom_call.1} parent=1 // pred_check
      %p60 = pneg %p28
    $region19: #{tpu_custom_call.1} parent=1 // pred_check_branch
      %62 = sbr.rel (%p60) target = $region21
    $region20: #{tpu_custom_call.1} parent=1 // pred_region
      %v63 = vld [vmem:[#allocation2] sm:$0x3]
      %v64 = vld [vmem:[%s1] sm:$0x3]
      %66 = vset.pattern.permute.xlu0 0
      %67 = vperm.xlu0 %66, %v64
      %v68 = vpop.permute.xlu0 %67
      %v70 = vmul.f32 %v63, %v68
      %71 = vst.msk [vmem:[#allocation6] sm:$0x3] %vm58, %v70
    $region21: #{tpu_custom_call.1} parent=1 // pred_fallthru
      _
    // Predicated region
    $region22: #{tpu_custom_call.1} parent=1 // pred_check
      _
    $region23: #{tpu_custom_call.1} parent=1 // pred_check_branch
      %73 = sbr.rel (0) target = $region25
    $region24: #{tpu_custom_call.1} parent=1 // pred_region
      %75 = vsyncadd [#allocation5], 0
      %s77 = sshll.u32 [#allocation6], 4
      %s78 = int_to_ptr.vmem [resolvable:$true] %s77
      %s79 = sshll.u32 %s2, 4
      %s80 = int_to_ptr.hbm [resolvable:$true] %s79
      %82 = dma.vmem_to_hbm [thread:$0]  %s78, 32, %s80, [#allocation5]
    $region25: #{tpu_custom_call.1} parent=1 // pred_fallthru
      _
    // Predicated region
    $region26: #{tpu_custom_call.1} parent=1 // pred_check
      _
    $region27: #{tpu_custom_call.1} parent=1 // pred_check_branch
      %84 = sbr.rel (0) target = $region29
    $region28: #{tpu_custom_call.1} parent=1 // pred_region
      %86 = dma.done [#allocation5], 32
    $region29: #{tpu_custom_call.1} parent=1 // pred_fallthru
      _
    %87 = vsyncpa [#allocation4], 1
    %88 = vsyncpa [#allocation5], 1

</llo_original>
